<compile_context>
chip_gen: v7x
topology: tpu7x:2x2x1
jax: 0.10.0
libtpu: 0.0.40
codegen_flags: <defaults>
</compile_context>

<pallas_src>
import math

import jax
import jax.numpy as jnp
from jax.experimental import pallas as pl
from jax.experimental.pallas import tpu as pltpu

LN_EPS = 1e-5  # nn.LayerNorm default


def _round_up(x, m):
    return ((x + m - 1) // m) * m


def _layernorm(x, gamma, beta):
    mu = jnp.mean(x, axis=-1, keepdims=True)
    var = jnp.mean((x - mu) * (x - mu), axis=-1, keepdims=True)
    return (x - mu) * jax.lax.rsqrt(var + LN_EPS) * gamma + beta


def classifier_kernel(txt_ref, img_ref,
                      gt_ref, bt_ref, gi_ref, bi_ref,
                      w1t_ref, w1i_ref, b1_ref, w2_ref, b2_ref,
                      out_ref):
    # LayerNorm both modality pooler outputs (VPU elementwise + lane reduce).
    t = _layernorm(txt_ref[...], gt_ref[...], bt_ref[...])
    i = _layernorm(img_ref[...], gi_ref[...], bi_ref[...])

    # torch.cat([t, i], dim=1) @ W1  ==  t @ W1[:H] + i @ W1[H:]
    # (split matmul avoids materializing the (TILE_B, 2H) concat buffer)
    h = (jnp.dot(t, w1t_ref[...], preferred_element_type=jnp.float32)
         + jnp.dot(i, w1i_ref[...], preferred_element_type=jnp.float32)
         + b1_ref[...])

    # nn.GELU() default = exact (erf) formulation.
    h = 0.5 * h * (1.0 + jax.lax.erf(h * (1.0 / math.sqrt(2.0))))

    # nn.Dropout(0.3) — inference mode => identity.

    # Linear(2H//4 -> num_classes), lane-padded to 128 columns (zeros).
    out_ref[...] = (jnp.dot(h, w2_ref[...], preferred_element_type=jnp.float32)
                    + b2_ref[...]).astype(out_ref.dtype)


def multimodal_classifier_head(text_pooled, image_pooled, params, *, tile_b=256):
    """Pallas forward of the MultimodalClassifier head.

    text_pooled, image_pooled: (B, H) float32 pooler outputs.
    Returns logits (B, num_classes) float32.
    """
    B, H = text_pooled.shape
    mid = params["w1"].shape[-1]
    num_classes = params["w2"].shape[-1]

    # --- wrapper-side layout plumbing ------------------------------------
    # Split the first Linear's weight so the kernel never concatenates.
    w1_t = params["w1"][:H, :]
    w1_i = params["w1"][H:, :]

    # Lane-pad the classifier output to a multiple of 128 (dense stores).
    n_pad = _round_up(max(num_classes, 128), 128)
    w2 = jnp.pad(params["w2"], ((0, 0), (0, n_pad - num_classes)))
    b2 = jnp.pad(params["b2"], ((0, 0), (0, n_pad - num_classes)))

    # Pick the batch tile and pad B so every tile is full and sublane-aligned.
    tile_b = min(tile_b, _round_up(B, 8))
    b_pad = _round_up(B, tile_b)
    if b_pad != B:
        pad = ((0, b_pad - B), (0, 0))
        text_pooled = jnp.pad(text_pooled, pad)
        image_pooled = jnp.pad(image_pooled, pad)

    grid = (b_pad // tile_b,)

    # Tiled specs for the per-row tensors; weights / LN params stay at a
    # constant block index so they are VMEM-resident across the whole grid.
    row_spec = pl.BlockSpec((tile_b, H), lambda i: (i, 0))
    const = lambda shape: pl.BlockSpec(shape, lambda i: (0, 0))

    flops = (4 * b_pad * H * mid          # split first matmul (2 * MAC)
             + 2 * b_pad * mid * n_pad    # second matmul
             + 16 * b_pad * H)            # two LayerNorms (rough)
    bytes_accessed = 4 * (2 * b_pad * H                  # pooler inputs
                          + 2 * H * mid + mid * n_pad    # weights
                          + 4 * H + mid + n_pad          # LN params + biases
                          + b_pad * n_pad)               # output
    cost = pl.CostEstimate(flops=flops,
                           transcendentals=b_pad * mid,  # erf
                           bytes_accessed=bytes_accessed)

    logits_padded = pl.pallas_call(
        classifier_kernel,
        out_shape=jax.ShapeDtypeStruct((b_pad, n_pad), jnp.float32),
        grid=grid,
        in_specs=[
            row_spec,                       # text pooler tile
            row_spec,                       # image pooler tile
            const((1, H)), const((1, H)),   # text LayerNorm gamma/beta
            const((1, H)), const((1, H)),   # image LayerNorm gamma/beta
            const((H, mid)),                # w1[:H]
            const((H, mid)),                # w1[H:]
            const((1, mid)),                # b1
            const((mid, n_pad)),            # w2 (lane-padded)
            const((1, n_pad)),              # b2 (lane-padded)
        ],
        out_specs=pl.BlockSpec((tile_b, n_pad), lambda i: (i, 0)),
        compiler_params=pltpu.CompilerParams(
            dimension_semantics=("parallel",)),
        cost_estimate=cost,
    )(text_pooled, image_pooled,
      params["gamma_t"], params["beta_t"],
      params["gamma_i"], params["beta_i"],
      w1_t, w1_i, params["b1"], w2, b2)

    return logits_padded[:B, :num_classes]


def init_params(key, hidden, num_classes):
    dim = 2 * hidden          # text hidden + image hidden
    mid = dim // 4
    ks = jax.random.split(key, 4)
    # Deterministic, PyTorch-Linear-style uniform init.
    lim1 = 1.0 / math.sqrt(dim)
    lim2 = 1.0 / math.sqrt(mid)
    return {
        "gamma_t": jnp.ones((1, hidden), jnp.float32),
        "beta_t": jnp.zeros((1, hidden), jnp.float32),
        "gamma_i": jnp.ones((1, hidden), jnp.float32),
        "beta_i": jnp.zeros((1, hidden), jnp.float32),
        "w1": jax.random.uniform(ks[0], (dim, mid), jnp.float32, -lim1, lim1),
        "b1": jax.random.uniform(ks[1], (1, mid), jnp.float32, -lim1, lim1),
        "w2": jax.random.uniform(ks[2], (mid, num_classes), jnp.float32, -lim2, lim2),
        "b2": jax.random.uniform(ks[3], (1, num_classes), jnp.float32, -lim2, lim2),
    }


def reference(text_pooled, image_pooled, p):
    t = _layernorm(text_pooled, p["gamma_t"], p["beta_t"])
    i = _layernorm(image_pooled, p["gamma_i"], p["beta_i"])
    x = jnp.concatenate([t, i], axis=-1)
    h = x @ p["w1"] + p["b1"]
    h = 0.5 * h * (1.0 + jax.lax.erf(h / math.sqrt(2.0)))
    return h @ p["w2"] + p["b2"]


if __name__ == "__main__":
    B, H, NUM_CLASSES = 2, 32, 9   # small stand-in for hidden_size=768

    key = jax.random.PRNGKey(0)
    k_txt, k_img, k_par = jax.random.split(key, 3)

    # Stand-in pooler outputs from the (untranslated) BERT / ViT backbones.
    text_pooled = jax.random.normal(k_txt, (B, H), jnp.float32)
    image_pooled = jax.random.normal(k_img, (B, H), jnp.float32)

    params = init_params(k_par, H, NUM_CLASSES)

    logits = multimodal_classifier_head(text_pooled, image_pooled, params)
    logits = jax.block_until_ready(logits)

    ref = reference(text_pooled, image_pooled, params)
    assert logits.shape == (B, NUM_CLASSES)
    assert jnp.allclose(logits, ref, atol=1e-4, rtol=1e-4)

    print("KERNEL_OK")
</pallas_src>

<mosaic_0001>
module attributes {stable_mosaic.version = 11 : i64} {
  func.func @classifier_kernel(%arg0: i32, %arg1: memref<8x32xf32, #tpu.memory_space<vmem>>, %arg2: memref<8x32xf32, #tpu.memory_space<vmem>>, %arg3: memref<1x32xf32, #tpu.memory_space<vmem>>, %arg4: memref<1x32xf32, #tpu.memory_space<vmem>>, %arg5: memref<1x32xf32, #tpu.memory_space<vmem>>, %arg6: memref<1x32xf32, #tpu.memory_space<vmem>>, %arg7: memref<32x16xf32, #tpu.memory_space<vmem>>, %arg8: memref<32x16xf32, #tpu.memory_space<vmem>>, %arg9: memref<1x16xf32, #tpu.memory_space<vmem>>, %arg10: memref<16x128xf32, #tpu.memory_space<vmem>>, %arg11: memref<1x128xf32, #tpu.memory_space<vmem>>, %arg12: memref<8x128xf32, #tpu.memory_space<vmem>>) attributes {dimension_semantics = [#tpu.dimension_semantics<parallel>], iteration_bounds = array<i64: 1>, scalar_prefetch = 0 : i64, scratch_operands = 0 : i64, tpu.core_type = #tpu.core_type<tc>, window_params = [{transform_indices = @transform_0, window_bounds = array<i64: 8, 32>}, {transform_indices = @transform_1, window_bounds = array<i64: 8, 32>}, {pipeline_mode = #tpu.pipeline_mode<synchronous>, transform_indices = @transform_2, window_bounds = array<i64: 1, 32>}, {pipeline_mode = #tpu.pipeline_mode<synchronous>, transform_indices = @transform_3, window_bounds = array<i64: 1, 32>}, {pipeline_mode = #tpu.pipeline_mode<synchronous>, transform_indices = @transform_4, window_bounds = array<i64: 1, 32>}, {pipeline_mode = #tpu.pipeline_mode<synchronous>, transform_indices = @transform_5, window_bounds = array<i64: 1, 32>}, {pipeline_mode = #tpu.pipeline_mode<synchronous>, transform_indices = @transform_6, window_bounds = array<i64: 32, 16>}, {pipeline_mode = #tpu.pipeline_mode<synchronous>, transform_indices = @transform_7, window_bounds = array<i64: 32, 16>}, {pipeline_mode = #tpu.pipeline_mode<synchronous>, transform_indices = @transform_8, window_bounds = array<i64: 1, 16>}, {pipeline_mode = #tpu.pipeline_mode<synchronous>, transform_indices = @transform_9, window_bounds = array<i64: 16, 128>}, {pipeline_mode = #tpu.pipeline_mode<synchronous>, transform_indices = @transform_10, window_bounds = array<i64: 1, 128>}, {transform_indices = @transform_11, window_bounds = array<i64: 8, 128>}]} {
    %c0 = arith.constant 0 : index
    %c0_0 = arith.constant 0 : index
    %0 = vector.load %arg1[%c0, %c0_0] : memref<8x32xf32, #tpu.memory_space<vmem>>, vector<8x32xf32>
    %c0_1 = arith.constant 0 : index
    %c0_2 = arith.constant 0 : index
    %1 = vector.load %arg3[%c0_1, %c0_2] : memref<1x32xf32, #tpu.memory_space<vmem>>, vector<1x32xf32>
    %c0_3 = arith.constant 0 : index
    %c0_4 = arith.constant 0 : index
    %2 = vector.load %arg4[%c0_3, %c0_4] : memref<1x32xf32, #tpu.memory_space<vmem>>, vector<1x32xf32>
    %cst = arith.constant dense<0.000000e+00> : vector<8xf32>
    %3 = vector.multi_reduction <add>, %0, %cst [1] : vector<8x32xf32> to vector<8xf32>
    %4 = vector.shape_cast %3 : vector<8xf32> to vector<8x1xf32>
    %cst_5 = arith.constant 3.200000e+01 : f32
    %5 = vector.broadcast %cst_5 : f32 to vector<8x1xf32>
    %6 = arith.divf %4, %5 : vector<8x1xf32>
    %7 = vector.broadcast %6 : vector<8x1xf32> to vector<8x32xf32>
    %8 = arith.subf %0, %7 : vector<8x32xf32>
    %9 = vector.broadcast %6 : vector<8x1xf32> to vector<8x32xf32>
    %10 = arith.subf %0, %9 : vector<8x32xf32>
    %11 = arith.mulf %8, %10 : vector<8x32xf32>
    %cst_6 = arith.constant dense<0.000000e+00> : vector<8xf32>
    %12 = vector.multi_reduction <add>, %11, %cst_6 [1] : vector<8x32xf32> to vector<8xf32>
    %13 = vector.shape_cast %12 : vector<8xf32> to vector<8x1xf32>
    %cst_7 = arith.constant 3.200000e+01 : f32
    %14 = vector.broadcast %cst_7 : f32 to vector<8x1xf32>
    %15 = arith.divf %13, %14 : vector<8x1xf32>
    %16 = vector.broadcast %6 : vector<8x1xf32> to vector<8x32xf32>
    %17 = arith.subf %0, %16 : vector<8x32xf32>
    %cst_8 = arith.constant 9.99999974E-6 : f32
    %18 = vector.broadcast %cst_8 : f32 to vector<8x1xf32>
    %19 = arith.addf %15, %18 : vector<8x1xf32>
    %20 = math.rsqrt %19 : vector<8x1xf32>
    %21 = vector.broadcast %20 : vector<8x1xf32> to vector<8x32xf32>
    %22 = arith.mulf %17, %21 : vector<8x32xf32>
    %23 = vector.broadcast %1 : vector<1x32xf32> to vector<8x32xf32>
    %24 = arith.mulf %22, %23 : vector<8x32xf32>
    %25 = vector.broadcast %2 : vector<1x32xf32> to vector<8x32xf32>
    %26 = arith.addf %24, %25 : vector<8x32xf32>
    %c0_9 = arith.constant 0 : index
    %c0_10 = arith.constant 0 : index
    %27 = vector.load %arg2[%c0_9, %c0_10] : memref<8x32xf32, #tpu.memory_space<vmem>>, vector<8x32xf32>
    %c0_11 = arith.constant 0 : index
    %c0_12 = arith.constant 0 : index
    %28 = vector.load %arg5[%c0_11, %c0_12] : memref<1x32xf32, #tpu.memory_space<vmem>>, vector<1x32xf32>
    %c0_13 = arith.constant 0 : index
    %c0_14 = arith.constant 0 : index
    %29 = vector.load %arg6[%c0_13, %c0_14] : memref<1x32xf32, #tpu.memory_space<vmem>>, vector<1x32xf32>
    %cst_15 = arith.constant dense<0.000000e+00> : vector<8xf32>
    %30 = vector.multi_reduction <add>, %27, %cst_15 [1] : vector<8x32xf32> to vector<8xf32>
    %31 = vector.shape_cast %30 : vector<8xf32> to vector<8x1xf32>
    %cst_16 = arith.constant 3.200000e+01 : f32
    %32 = vector.broadcast %cst_16 : f32 to vector<8x1xf32>
    %33 = arith.divf %31, %32 : vector<8x1xf32>
    %34 = vector.broadcast %33 : vector<8x1xf32> to vector<8x32xf32>
    %35 = arith.subf %27, %34 : vector<8x32xf32>
    %36 = vector.broadcast %33 : vector<8x1xf32> to vector<8x32xf32>
    %37 = arith.subf %27, %36 : vector<8x32xf32>
    %38 = arith.mulf %35, %37 : vector<8x32xf32>
    %cst_17 = arith.constant dense<0.000000e+00> : vector<8xf32>
    %39 = vector.multi_reduction <add>, %38, %cst_17 [1] : vector<8x32xf32> to vector<8xf32>
    %40 = vector.shape_cast %39 : vector<8xf32> to vector<8x1xf32>
    %cst_18 = arith.constant 3.200000e+01 : f32
    %41 = vector.broadcast %cst_18 : f32 to vector<8x1xf32>
    %42 = arith.divf %40, %41 : vector<8x1xf32>
    %43 = vector.broadcast %33 : vector<8x1xf32> to vector<8x32xf32>
    %44 = arith.subf %27, %43 : vector<8x32xf32>
    %cst_19 = arith.constant 9.99999974E-6 : f32
    %45 = vector.broadcast %cst_19 : f32 to vector<8x1xf32>
    %46 = arith.addf %42, %45 : vector<8x1xf32>
    %47 = math.rsqrt %46 : vector<8x1xf32>
    %48 = vector.broadcast %47 : vector<8x1xf32> to vector<8x32xf32>
    %49 = arith.mulf %44, %48 : vector<8x32xf32>
    %50 = vector.broadcast %28 : vector<1x32xf32> to vector<8x32xf32>
    %51 = arith.mulf %49, %50 : vector<8x32xf32>
    %52 = vector.broadcast %29 : vector<1x32xf32> to vector<8x32xf32>
    %53 = arith.addf %51, %52 : vector<8x32xf32>
    %c0_20 = arith.constant 0 : index
    %c0_21 = arith.constant 0 : index
    %54 = vector.load %arg7[%c0_20, %c0_21] : memref<32x16xf32, #tpu.memory_space<vmem>>, vector<32x16xf32>
    %cst_22 = arith.constant dense<0.000000e+00> : vector<8x16xf32>
    %55 = tpu.matmul %26, %54, %cst_22 {dimension_numbers = #tpu.dot_dimension_numbers<[1], [0], [0], [1], [0, 0, 1, 1], [], []>} : vector<8x32xf32>, vector<32x16xf32>, vector<8x16xf32> -> vector<8x16xf32>
    %c0_23 = arith.constant 0 : index
    %c0_24 = arith.constant 0 : index
    %56 = vector.load %arg8[%c0_23, %c0_24] : memref<32x16xf32, #tpu.memory_space<vmem>>, vector<32x16xf32>
    %cst_25 = arith.constant dense<0.000000e+00> : vector<8x16xf32>
    %57 = tpu.matmul %53, %56, %cst_25 {dimension_numbers = #tpu.dot_dimension_numbers<[1], [0], [0], [1], [0, 0, 1, 1], [], []>} : vector<8x32xf32>, vector<32x16xf32>, vector<8x16xf32> -> vector<8x16xf32>
    %58 = arith.addf %55, %57 : vector<8x16xf32>
    %c0_26 = arith.constant 0 : index
    %c0_27 = arith.constant 0 : index
    %59 = vector.load %arg9[%c0_26, %c0_27] : memref<1x16xf32, #tpu.memory_space<vmem>>, vector<1x16xf32>
    %60 = vector.broadcast %59 : vector<1x16xf32> to vector<8x16xf32>
    %61 = arith.addf %58, %60 : vector<8x16xf32>
    %cst_28 = arith.constant 5.000000e-01 : f32
    %62 = vector.broadcast %cst_28 : f32 to vector<8x16xf32>
    %63 = arith.mulf %62, %61 : vector<8x16xf32>
    %cst_29 = arith.constant 0.707106769 : f32
    %64 = vector.broadcast %cst_29 : f32 to vector<8x16xf32>
    %65 = arith.mulf %61, %64 : vector<8x16xf32>
    %66 = math.erf %65 : vector<8x16xf32>
    %cst_30 = arith.constant 1.000000e+00 : f32
    %67 = vector.broadcast %cst_30 : f32 to vector<8x16xf32>
    %68 = arith.addf %67, %66 : vector<8x16xf32>
    %69 = arith.mulf %63, %68 : vector<8x16xf32>
    %c0_31 = arith.constant 0 : index
    %c0_32 = arith.constant 0 : index
    %70 = vector.load %arg10[%c0_31, %c0_32] : memref<16x128xf32, #tpu.memory_space<vmem>>, vector<16x128xf32>
    %cst_33 = arith.constant dense<0.000000e+00> : vector<8x128xf32>
    %71 = tpu.matmul %69, %70, %cst_33 {dimension_numbers = #tpu.dot_dimension_numbers<[1], [0], [0], [1], [0, 0, 1, 1], [], []>} : vector<8x16xf32>, vector<16x128xf32>, vector<8x128xf32> -> vector<8x128xf32>
    %c0_34 = arith.constant 0 : index
    %c0_35 = arith.constant 0 : index
    %72 = vector.load %arg11[%c0_34, %c0_35] : memref<1x128xf32, #tpu.memory_space<vmem>>, vector<1x128xf32>
    %73 = vector.broadcast %72 : vector<1x128xf32> to vector<8x128xf32>
    %74 = arith.addf %71, %73 : vector<8x128xf32>
    %c0_36 = arith.constant 0 : index
    %c0_37 = arith.constant 0 : index
    %75 = vector.load %arg12[%c0_36, %c0_37] : memref<8x128xf32, #tpu.memory_space<vmem>>, vector<8x128xf32>
    tpu.vector_store %arg12[%c0_36, %c0_37], %74 {strides = array<i32>} : memref<8x128xf32, #tpu.memory_space<vmem>>, vector<8x128xf32>,
    return
  }
  func.func @transform_0(%arg0: i32) -> (i32, i32) {
    %c0_i32 = arith.constant 0 : i32
    %c0_i32_0 = arith.constant 0 : i32
    return %arg0, %c0_i32 : i32, i32
  }
  func.func @transform_1(%arg0: i32) -> (i32, i32) {
    %c0_i32 = arith.constant 0 : i32
    %c0_i32_0 = arith.constant 0 : i32
    return %arg0, %c0_i32 : i32, i32
  }
  func.func @transform_2(%arg0: i32) -> (i32, i32) {
    %c0_i32 = arith.constant 0 : i32
    %c0_i32_0 = arith.constant 0 : i32
    %c0_i32_1 = arith.constant 0 : i32
    return %c0_i32, %c0_i32_0 : i32, i32
  }
  func.func @transform_3(%arg0: i32) -> (i32, i32) {
    %c0_i32 = arith.constant 0 : i32
    %c0_i32_0 = arith.constant 0 : i32
    %c0_i32_1 = arith.constant 0 : i32
    return %c0_i32, %c0_i32_0 : i32, i32
  }
  func.func @transform_4(%arg0: i32) -> (i32, i32) {
    %c0_i32 = arith.constant 0 : i32
    %c0_i32_0 = arith.constant 0 : i32
    %c0_i32_1 = arith.constant 0 : i32
    return %c0_i32, %c0_i32_0 : i32, i32
  }
  func.func @transform_5(%arg0: i32) -> (i32, i32) {
    %c0_i32 = arith.constant 0 : i32
    %c0_i32_0 = arith.constant 0 : i32
    %c0_i32_1 = arith.constant 0 : i32
    return %c0_i32, %c0_i32_0 : i32, i32
  }
  func.func @transform_6(%arg0: i32) -> (i32, i32) {
    %c0_i32 = arith.constant 0 : i32
    %c0_i32_0 = arith.constant 0 : i32
    %c0_i32_1 = arith.constant 0 : i32
    return %c0_i32, %c0_i32_0 : i32, i32
  }
  func.func @transform_7(%arg0: i32) -> (i32, i32) {
    %c0_i32 = arith.constant 0 : i32
    %c0_i32_0 = arith.constant 0 : i32
    %c0_i32_1 = arith.constant 0 : i32
    return %c0_i32, %c0_i32_0 : i32, i32
  }
  func.func @transform_8(%arg0: i32) -> (i32, i32) {
    %c0_i32 = arith.constant 0 : i32
    %c0_i32_0 = arith.constant 0 : i32
    %c0_i32_1 = arith.constant 0 : i32
    return %c0_i32, %c0_i32_0 : i32, i32
  }
  func.func @transform_9(%arg0: i32) -> (i32, i32) {
    %c0_i32 = arith.constant 0 : i32
    %c0_i32_0 = arith.constant 0 : i32
    %c0_i32_1 = arith.constant 0 : i32
    return %c0_i32, %c0_i32_0 : i32, i32
  }
  func.func @transform_10(%arg0: i32) -> (i32, i32) {
    %c0_i32 = arith.constant 0 : i32
    %c0_i32_0 = arith.constant 0 : i32
    %c0_i32_1 = arith.constant 0 : i32
    return %c0_i32, %c0_i32_0 : i32, i32
  }
  func.func @transform_11(%arg0: i32) -> (i32, i32) {
    %c0_i32 = arith.constant 0 : i32
    %c0_i32_0 = arith.constant 0 : i32
    return %arg0, %c0_i32 : i32, i32
  }
}

</mosaic_0001>

<llo_original>
// kernel: tpu_custom_call.1
$region0: #{tpu_custom_call.1}
  #allocation0 [shape = 'u32[]', space=smem, size = 0x4, offset = 0x4, fixed_abs, tag = 'smem constant byte address 0x4 - core index']
  #allocation1 [shape = 'u32[144,128]{1,0:T(1,128)}', space=vmem, size = 0x12000, scoped, tag = 'internal scratch']
  %s0 = inlined_call_operand.vmem [shape: f32[8,32], index: 0, kind: input, shape index: {}]
  %s1 = inlined_call_operand.vmem [shape: f32[8,32], index: 1, kind: input, shape index: {}]
  %s2 = inlined_call_operand.vmem [shape: f32[1,32], index: 2, kind: input, shape index: {}]
  %s3 = inlined_call_operand.vmem [shape: f32[1,32], index: 3, kind: input, shape index: {}]
  %s4 = inlined_call_operand.vmem [shape: f32[1,32], index: 4, kind: input, shape index: {}]
  %s5 = inlined_call_operand.vmem [shape: f32[1,32], index: 5, kind: input, shape index: {}]
  %s6 = inlined_call_operand.vmem [shape: f32[32,16], index: 6, kind: input, shape index: {}]
  %s7 = inlined_call_operand.vmem [shape: f32[32,16], index: 7, kind: input, shape index: {}]
  %s8 = inlined_call_operand.vmem [shape: f32[1,16], index: 8, kind: input, shape index: {}]
  %s9 = inlined_call_operand.vmem [shape: f32[16,128], index: 9, kind: input, shape index: {}]
  %s10 = inlined_call_operand.vmem [shape: f32[1,128], index: 10, kind: input, shape index: {}]
  %s11 = inlined_call_operand.hbm [shape: f32[8,128], index: 11, kind: output, shape index: {}]
  %s12 = sld [smem:[#allocation0]]
  $region54: #{tpu_custom_call.1} parent=0
    _
  %s14 = ssub.s32 1, %s12
  %s15 = scalar_select 0, %s14, %s12
  $region1: #{tpu_custom_call.1} parent=0
    #allocation2 [shape = 'u8[4096]{0}', space=vmem, size = 0x1000, scoped, tag = 'output window, operand 0, single buffered']
    #allocation3 [shape = 's32[1]{0}', space=sflag, size = 0x4, scoped, tag = 'scoped memory for tpu_custom_call.1']
    %16 = vsyncpa [#allocation3], 0
    // Predicated region
    $region2: #{tpu_custom_call.1} parent=1 // pred_check
      _
    $region3: #{tpu_custom_call.1} parent=1 // pred_check_branch
      %18 = sbr.rel (0) target = $region5
    $region4: #{tpu_custom_call.1} parent=1 // pred_region
      _
    $region5: #{tpu_custom_call.1} parent=1 // pred_fallthru
      _
    // Predicated region
    $region6: #{tpu_custom_call.1} parent=1 // pred_check
      _
    $region7: #{tpu_custom_call.1} parent=1 // pred_check_branch
      %20 = sbr.rel (0) target = $region9
    $region8: #{tpu_custom_call.1} parent=1 // pred_region
      _
    $region9: #{tpu_custom_call.1} parent=1 // pred_fallthru
      _
    // Predicated region
    $region10: #{tpu_custom_call.1} parent=1 // pred_check
      _
    $region11: #{tpu_custom_call.1} parent=1 // pred_check_branch
      %22 = sbr.rel (0) target = $region13
    $region12: #{tpu_custom_call.1} parent=1 // pred_region
      _
    $region13: #{tpu_custom_call.1} parent=1 // pred_fallthru
      _
    // Predicated region
    $region14: #{tpu_custom_call.1} parent=1 // pred_check
      _
    $region15: #{tpu_custom_call.1} parent=1 // pred_check_branch
      %24 = sbr.rel (0) target = $region17
    $region16: #{tpu_custom_call.1} parent=1 // pred_region
      _
    $region17: #{tpu_custom_call.1} parent=1 // pred_fallthru
      _
    // Predicated region
    $region18: #{tpu_custom_call.1} parent=1 // pred_check
      _
    $region19: #{tpu_custom_call.1} parent=1 // pred_check_branch
      %26 = sbr.rel (0) target = $region21
    $region20: #{tpu_custom_call.1} parent=1 // pred_region
      _
    $region21: #{tpu_custom_call.1} parent=1 // pred_fallthru
      _
    // Predicated region
    $region22: #{tpu_custom_call.1} parent=1 // pred_check
      _
    $region23: #{tpu_custom_call.1} parent=1 // pred_check_branch
      %28 = sbr.rel (0) target = $region25
    $region24: #{tpu_custom_call.1} parent=1 // pred_region
      _
    $region25: #{tpu_custom_call.1} parent=1 // pred_fallthru
      _
    // Predicated region
    $region26: #{tpu_custom_call.1} parent=1 // pred_check
      _
    $region27: #{tpu_custom_call.1} parent=1 // pred_check_branch
      %30 = sbr.rel (0) target = $region29
    $region28: #{tpu_custom_call.1} parent=1 // pred_region
      _
    $region29: #{tpu_custom_call.1} parent=1 // pred_fallthru
      _
    // Predicated region
    $region30: #{tpu_custom_call.1} parent=1 // pred_check
      _
    $region31: #{tpu_custom_call.1} parent=1 // pred_check_branch
      %32 = sbr.rel (0) target = $region33
    $region32: #{tpu_custom_call.1} parent=1 // pred_region
      _
    $region33: #{tpu_custom_call.1} parent=1 // pred_fallthru
      _
    // Predicated region
    $region34: #{tpu_custom_call.1} parent=1 // pred_check
      _
    $region35: #{tpu_custom_call.1} parent=1 // pred_check_branch
      %34 = sbr.rel (0) target = $region37
    $region36: #{tpu_custom_call.1} parent=1 // pred_region
      _
    $region37: #{tpu_custom_call.1} parent=1 // pred_fallthru
      _
    // Predicated region
    $region38: #{tpu_custom_call.1} parent=1 // pred_check
      _
    $region39: #{tpu_custom_call.1} parent=1 // pred_check_branch
      %36 = sbr.rel (0) target = $region41
    $region40: #{tpu_custom_call.1} parent=1 // pred_region
      _
    $region41: #{tpu_custom_call.1} parent=1 // pred_fallthru
      _
    // Predicated region
    $region42: #{tpu_custom_call.1} parent=1 // pred_check
      _
    $region43: #{tpu_custom_call.1} parent=1 // pred_check_branch
      %38 = sbr.rel (0) target = $region45
    $region44: #{tpu_custom_call.1} parent=1 // pred_region
      _
    $region45: #{tpu_custom_call.1} parent=1 // pred_fallthru
      _
    %v39 = vld [vmem:[%s0] sm:$0xff]
    %v40 = vld [vmem:[%s2] sm:$0x1]
    %v41 = vld [vmem:[%s3] sm:$0x1]
    %vm42 = vcmask 261120
    %v43 = vsel %vm42, %v39, 0.0
    %44 = vadd.xlane.f32.xlu0 %v43
    %v45 = vpop.xlane.xlu0 %44
    %v46 = vrcp.pop 32.0
    %v47 = vmul.f32 %v45, %v46
    %v48 = vsub.f32 %v39, %v47
    %v49 = vmul.f32 %v48, %v48
    %v50 = vsel %vm42, %v49, 0.0
    %51 = vadd.xlane.f32.xlu0 %v50
    %v52 = vpop.xlane.xlu0 %51
    %v53 = vmul.f32 %v52, %v46
    %v54 = vadd.f32 %v53, 1e-05
    %v55 = vrsqrt.pop %v54
    %v56 = vmul.f32 %v48, %v55
    %v58 = vlaneseq
    %v59 = vshrl.u32 %v58, 7
    %v60 = vsub.s32 0, %v59
    %v61 = vrot.slane %v40, %v60
    %v63 = vmul.f32 %v56, %v61
    %v65 = vlaneseq
    %v66 = vshrl.u32 %v65, 7
    %v67 = vsub.s32 0, %v66
    %v68 = vrot.slane %v41, %v67
    %v70 = vadd.f32 %v63, %v68
    %v71 = vld [vmem:[%s1] sm:$0xff]
    %v72 = vld [vmem:[%s4] sm:$0x1]
    %v73 = vld [vmem:[%s5] sm:$0x1]
    %v74 = vsel %vm42, %v71, 0.0
    %75 = vadd.xlane.f32.xlu0 %v74
    %v76 = vpop.xlane.xlu0 %75
    %v77 = vmul.f32 %v76, %v46
    %v78 = vsub.f32 %v71, %v77
    %v79 = vmul.f32 %v78, %v78
    %v80 = vsel %vm42, %v79, 0.0
    %81 = vadd.xlane.f32.xlu0 %v80
    %v82 = vpop.xlane.xlu0 %81
    %v83 = vmul.f32 %v82, %v46
    %v84 = vadd.f32 %v83, 1e-05
    %v85 = vrsqrt.pop %v84
    %v86 = vmul.f32 %v78, %v85
    %v88 = vlaneseq
    %v89 = vshrl.u32 %v88, 7
    %v90 = vsub.s32 0, %v89
    %v91 = vrot.slane %v72, %v90
    %v93 = vmul.f32 %v86, %v91
    %v95 = vlaneseq
    %v96 = vshrl.u32 %v95, 7
    %v97 = vsub.s32 0, %v96
    %v98 = vrot.slane %v73, %v97
    %v100 = vadd.f32 %v93, %v98
    %v101 = vld [vmem:[%s6] sm:$0xff]
    %v102 = vld [vmem:[%s6 + $0x8] sm:$0xff]
    %v103 = vld [vmem:[%s6 + $0x10] sm:$0xff]
    %v104 = vld [vmem:[%s6 + $0x18] sm:$0xff]
    %v105 = vld [vmem:[%s7] sm:$0xff]
    %v106 = vld [vmem:[%s7 + $0x8] sm:$0xff]
    %v107 = vld [vmem:[%s7 + $0x10] sm:$0xff]
    %v108 = vld [vmem:[%s7 + $0x18] sm:$0xff]
    %v110 = vsel %vm42, %v100, 0
    %112 = vmatprep.subr.mxu0 0.0
    %113 = vmatpush1.msra.mxu0 %v105
    %114 = vmatprep.subr.mxu0 0.0
    %115 = vmatpush1.msra.mxu0 %v106
    %116 = vmatprep.subr.mxu0 0.0
    %117 = vmatpush1.msra.mxu0 %v107
    %118 = vmatprep.subr.mxu0 0.0
    %119 = vmatpush1.msra.mxu0 %v108
    %120 = vmatprep.subr.mxu0 0.0
    %121 = vmatpush1.msra.mxu0 0.0
    %122 = vmatprep.subr.mxu0 0.0
    %123 = vmatpush1.msra.mxu0 0.0
    %124 = vmatprep.subr.mxu0 0.0
    %125 = vmatpush1.msra.mxu0 0.0
    %126 = vmatprep.subr.mxu0 0.0
    %127 = vmatpush1.msra.mxu0 0.0
    %128 = vmatprep.subr.mxu0 0.0
    %129 = vmatpush1.msra.mxu0 0.0
    %130 = vmatprep.subr.mxu0 0.0
    %131 = vmatpush1.msra.mxu0 0.0
    %132 = vmatprep.subr.mxu0 0.0
    %133 = vmatpush1.msra.mxu0 0.0
    %134 = vmatprep.subr.mxu0 0.0
    %135 = vmatpush1.msra.mxu0 0.0
    %136 = vmatprep.subr.mxu0 0.0
    %137 = vmatpush1.msra.mxu0 0.0
    %138 = vmatprep.subr.mxu0 0.0
    %139 = vmatpush1.msra.mxu0 0.0
    %140 = vmatprep.subr.mxu0 0.0
    %141 = vmatpush1.msra.mxu0 0.0
    %142 = vmatprep.subr.mxu0 0.0
    %143 = vmatpush1.msra.mxu0 0.0
    %144 = vmatprep.subr.mxu0 0.0
    %145 = vmatpush1.msra.mxu0 0.0
    %146 = vmatprep.subr.mxu0 0.0
    %147 = vmatpush1.msra.mxu0 0.0
    %148 = vmatprep.subr.mxu0 0.0
    %149 = vmatpush1.msra.mxu0 0.0
    %150 = vmatprep.subr.mxu0 0.0
    %151 = vmatpush1.msra.mxu0 0.0
    %152 = vmatprep.subr.mxu0 0.0
    %153 = vmatpush1.msra.mxu0 0.0
    %154 = vmatprep.subr.mxu0 0.0
    %155 = vmatpush1.msra.mxu0 0.0
    %156 = vmatprep.subr.mxu0 0.0
    %157 = vmatpush1.msra.mxu0 0.0
    %158 = vmatprep.subr.mxu0 0.0
    %159 = vmatpush1.msra.mxu0 0.0
    %160 = vmatprep.subr.mxu0 0.0
    %161 = vmatpush1.msra.mxu0 0.0
    %162 = vmatprep.subr.mxu0 0.0
    %163 = vmatpush1.msra.mxu0 0.0
    %164 = vmatprep.subr.mxu0 0.0
    %165 = vmatpush1.msra.mxu0 0.0
    %166 = vmatprep.subr.mxu0 0.0
    %167 = vmatpush1.msra.mxu0 0.0
    %168 = vmatprep.subr.mxu0 0.0
    %169 = vmatpush1.msra.mxu0 0.0
    %170 = vmatprep.subr.mxu0 0.0
    %171 = vmatpush1.msra.mxu0 0.0
    %172 = vmatprep.subr.mxu0 0.0
    %173 = vmatpush1.msra.mxu0 0.0
    %174 = vmatprep.subr.mxu0 0.0
    %175 = vmatpush1.msra.mxu0 0.0
    %176 = vmatprep.mubr.f32.mxu0 0.0
    %177 = vmatmul.mubr.f32.gmra.mrb[0].mxu0 %v110
    %v178 = vpop.f32.mrb[0].mxu0
    %v179 = vadd.f32 0.0, %v178
    %v180 = vpop.f32.mrb[0].mxu0
    %181 = vdwg.mxu0
    %v183 = vsel %vm42, %v70, 0
    %185 = vmatprep.subr.mxu0 0.0
    %186 = vmatpush1.msra.mxu0 %v101
    %187 = vmatprep.subr.mxu0 0.0
    %188 = vmatpush1.msra.mxu0 %v102
    %189 = vmatprep.subr.mxu0 0.0
    %190 = vmatpush1.msra.mxu0 %v103
    %191 = vmatprep.subr.mxu0 0.0
    %192 = vmatpush1.msra.mxu0 %v104
    %193 = vmatprep.subr.mxu0 0.0
    %194 = vmatpush1.msra.mxu0 0.0
    %195 = vmatprep.subr.mxu0 0.0
    %196 = vmatpush1.msra.mxu0 0.0
    %197 = vmatprep.subr.mxu0 0.0
    %198 = vmatpush1.msra.mxu0 0.0
    %199 = vmatprep.subr.mxu0 0.0
    %200 = vmatpush1.msra.mxu0 0.0
    %201 = vmatprep.subr.mxu0 0.0
    %202 = vmatpush1.msra.mxu0 0.0
    %203 = vmatprep.subr.mxu0 0.0
    %204 = vmatpush1.msra.mxu0 0.0
    %205 = vmatprep.subr.mxu0 0.0
    %206 = vmatpush1.msra.mxu0 0.0
    %207 = vmatprep.subr.mxu0 0.0
    %208 = vmatpush1.msra.mxu0 0.0
    %209 = vmatprep.subr.mxu0 0.0
    %210 = vmatpush1.msra.mxu0 0.0
    %211 = vmatprep.subr.mxu0 0.0
    %212 = vmatpush1.msra.mxu0 0.0
    %213 = vmatprep.subr.mxu0 0.0
    %214 = vmatpush1.msra.mxu0 0.0
    %215 = vmatprep.subr.mxu0 0.0
    %216 = vmatpush1.msra.mxu0 0.0
    %217 = vmatprep.subr.mxu0 0.0
    %218 = vmatpush1.msra.mxu0 0.0
    %219 = vmatprep.subr.mxu0 0.0
    %220 = vmatpush1.msra.mxu0 0.0
    %221 = vmatprep.subr.mxu0 0.0
    %222 = vmatpush1.msra.mxu0 0.0
    %223 = vmatprep.subr.mxu0 0.0
    %224 = vmatpush1.msra.mxu0 0.0
    %225 = vmatprep.subr.mxu0 0.0
    %226 = vmatpush1.msra.mxu0 0.0
    %227 = vmatprep.subr.mxu0 0.0
    %228 = vmatpush1.msra.mxu0 0.0
    %229 = vmatprep.subr.mxu0 0.0
    %230 = vmatpush1.msra.mxu0 0.0
    %231 = vmatprep.subr.mxu0 0.0
    %232 = vmatpush1.msra.mxu0 0.0
    %233 = vmatprep.subr.mxu0 0.0
    %234 = vmatpush1.msra.mxu0 0.0
    %235 = vmatprep.subr.mxu0 0.0
    %236 = vmatpush1.msra.mxu0 0.0
    %237 = vmatprep.subr.mxu0 0.0
    %238 = vmatpush1.msra.mxu0 0.0
    %239 = vmatprep.subr.mxu0 0.0
    %240 = vmatpush1.msra.mxu0 0.0
    %241 = vmatprep.subr.mxu0 0.0
    %242 = vmatpush1.msra.mxu0 0.0
    %243 = vmatprep.subr.mxu0 0.0
    %244 = vmatpush1.msra.mxu0 0.0
    %245 = vmatprep.subr.mxu0 0.0
    %246 = vmatpush1.msra.mxu0 0.0
    %247 = vmatprep.subr.mxu0 0.0
    %248 = vmatpush1.msra.mxu0 0.0
    %249 = vmatprep.mubr.f32.mxu0 0.0
    %250 = vmatmul.mubr.f32.gmra.mrb[0].mxu0 %v183
    %v251 = vpop.f32.mrb[0].mxu0
    %v252 = vadd.f32 %v179, %v251
    %v253 = vpop.f32.mrb[0].mxu0
    %254 = vdwg.mxu0
    %v255 = vld [vmem:[%s8] sm:$0x1]
    %v257 = vlaneseq
    %v258 = vshrl.u32 %v257, 7
    %v259 = vsub.s32 0, %v258
    %v260 = vrot.slane %v255, %v259
    %v262 = vadd.f32 %v252, %v260
    %v263 = vmul.f32 %v262, 0.5
    %v264 = vmul.f32 %v262, 0.70710677
    %v265 = verf.f32.pop %v264
    %v266 = vadd.f32 %v265, 1.0
    %v267 = vmul.f32 %v263, %v266
    %v268 = vld [vmem:[%s9] sm:$0xff]
    %v269 = vld [vmem:[%s9 + $0x8] sm:$0xff]
    %v270 = vld [vmem:[%s10] sm:$0x1]
    %v272 = vlaneseq
    %v273 = vshrl.u32 %v272, 7
    %v274 = vsub.s32 0, %v273
    %v275 = vrot.slane %v270, %v274
    %vm277 = vcmask 130048
    %v279 = vsel %vm277, %v267, 0
    %281 = vmatprep.subr.mxu0 0.0
    %282 = vmatpush1.msra.mxu0 %v268
    %283 = vmatprep.subr.mxu0 0.0
    %284 = vmatpush1.msra.mxu0 %v269
    %285 = vmatprep.subr.mxu0 0.0
    %286 = vmatpush1.msra.mxu0 0.0
    %287 = vmatprep.subr.mxu0 0.0
    %288 = vmatpush1.msra.mxu0 0.0
    %289 = vmatprep.subr.mxu0 0.0
    %290 = vmatpush1.msra.mxu0 0.0
    %291 = vmatprep.subr.mxu0 0.0
    %292 = vmatpush1.msra.mxu0 0.0
    %293 = vmatprep.subr.mxu0 0.0
    %294 = vmatpush1.msra.mxu0 0.0
    %295 = vmatprep.subr.mxu0 0.0
    %296 = vmatpush1.msra.mxu0 0.0
    %297 = vmatprep.subr.mxu0 0.0
    %298 = vmatpush1.msra.mxu0 0.0
    %299 = vmatprep.subr.mxu0 0.0
    %300 = vmatpush1.msra.mxu0 0.0
    %301 = vmatprep.subr.mxu0 0.0
    %302 = vmatpush1.msra.mxu0 0.0
    %303 = vmatprep.subr.mxu0 0.0
    %304 = vmatpush1.msra.mxu0 0.0
    %305 = vmatprep.subr.mxu0 0.0
    %306 = vmatpush1.msra.mxu0 0.0
    %307 = vmatprep.subr.mxu0 0.0
    %308 = vmatpush1.msra.mxu0 0.0
    %309 = vmatprep.subr.mxu0 0.0
    %310 = vmatpush1.msra.mxu0 0.0
    %311 = vmatprep.subr.mxu0 0.0
    %312 = vmatpush1.msra.mxu0 0.0
    %313 = vmatprep.subr.mxu0 0.0
    %314 = vmatpush1.msra.mxu0 0.0
    %315 = vmatprep.subr.mxu0 0.0
    %316 = vmatpush1.msra.mxu0 0.0
    %317 = vmatprep.subr.mxu0 0.0
    %318 = vmatpush1.msra.mxu0 0.0
    %319 = vmatprep.subr.mxu0 0.0
    %320 = vmatpush1.msra.mxu0 0.0
    %321 = vmatprep.subr.mxu0 0.0
    %322 = vmatpush1.msra.mxu0 0.0
    %323 = vmatprep.subr.mxu0 0.0
    %324 = vmatpush1.msra.mxu0 0.0
    %325 = vmatprep.subr.mxu0 0.0
    %326 = vmatpush1.msra.mxu0 0.0
    %327 = vmatprep.subr.mxu0 0.0
    %328 = vmatpush1.msra.mxu0 0.0
    %329 = vmatprep.subr.mxu0 0.0
    %330 = vmatpush1.msra.mxu0 0.0
    %331 = vmatprep.subr.mxu0 0.0
    %332 = vmatpush1.msra.mxu0 0.0
    %333 = vmatprep.subr.mxu0 0.0
    %334 = vmatpush1.msra.mxu0 0.0
    %335 = vmatprep.subr.mxu0 0.0
    %336 = vmatpush1.msra.mxu0 0.0
    %337 = vmatprep.subr.mxu0 0.0
    %338 = vmatpush1.msra.mxu0 0.0
    %339 = vmatprep.subr.mxu0 0.0
    %340 = vmatpush1.msra.mxu0 0.0
    %341 = vmatprep.subr.mxu0 0.0
    %342 = vmatpush1.msra.mxu0 0.0
    %343 = vmatprep.subr.mxu0 0.0
    %344 = vmatpush1.msra.mxu0 0.0
    %345 = vmatprep.mubr.f32.mxu0 0.0
    %346 = vmatmul.mubr.f32.gmra.mrb[0].mxu0 %v279
    %v347 = vpop.f32.mrb[0].mxu0
    %v348 = vadd.f32 %v275, %v347
    %v349 = vpop.f32.mrb[0].mxu0
    %350 = vdwg.mxu0
    %351 = vst [vmem:[#allocation2] sm:$0xff] %v348
    // Predicated region
    $region46: #{tpu_custom_call.1} parent=1 // pred_check
      _
    $region47: #{tpu_custom_call.1} parent=1 // pred_check_branch
      %353 = sbr.rel (0) target = $region49
    $region48: #{tpu_custom_call.1} parent=1 // pred_region
      %s355 = ssub.s32 128, 128
      %356 = vsyncadd [#allocation3], %s355
      %s358 = sshll.u32 [#allocation2], 4
      %s359 = int_to_ptr.vmem [resolvable:$true] %s358
      %361 = dma.vmem_to_hbm [thread:$0]  %s359, 128, %s11, [#allocation3]
    $region49: #{tpu_custom_call.1} parent=1 // pred_fallthru
      _
    // Predicated region
    $region50: #{tpu_custom_call.1} parent=1 // pred_check
      _
    $region51: #{tpu_custom_call.1} parent=1 // pred_check_branch
      %363 = sbr.rel (0) target = $region53
    $region52: #{tpu_custom_call.1} parent=1 // pred_region
      %364 = dma.done [#allocation3], 128
    $region53: #{tpu_custom_call.1} parent=1 // pred_fallthru
      _
    %365 = vsyncpa [#allocation3], 1

</llo_original>
